<compile_context>
chip_gen: v5e
topology: v5e:2x2
jax: 0.10.0
libtpu: 0.0.40
codegen_flags: <defaults>
</compile_context>

<pallas_src>
import functools

import jax
import jax.numpy as jnp
import numpy as np
from jax.experimental import pallas as pl
from jax.experimental.pallas import tpu as pltpu


# ---------------------------------------------------------------------------
# Fused Pallas kernel:
#   stage1 (K-batched block-diag conv_d|conv_f) -> ReLU -> '+' ->
#   stage2 (K-batched block-diag mlp) -> ReLU ->
#   spatial max over K (sublane-slice maximums) ->
#   temporal 'sum' accumulated over grid axis 1 (resident output block).
# Layout: channels on sublanes, points (M) on lanes.
# ---------------------------------------------------------------------------
def _p4d_kernel(x_ref, wdf_ref, w1_ref, out_ref, *, KH0, H1, K, lane_chunk):
    # x_ref  : (1, K*Cc, TM)        bf16   per-neighbor channels [dx,dy,dz,dt,feat...]
    # wdf_ref: (2*K*H0, K*Cc)       bf16   rows [all conv_d blocks | all conv_f blocks]
    # w1_ref : (K*H1, K*H0)         bf16   block-diag K copies of mlp weight
    # out_ref: (H1, TM)             f32    temporal-sum accumulator (resident block)
    wdf = wdf_ref[...]
    w1 = w1_ref[...]
    tm = out_ref.shape[-1]
    first = pl.program_id(1) == 0
    rest = pl.program_id(1) != 0

    # Lane-chunked epilogue: keeps the (128, chunk) f32 intermediates in vregs
    # (<= ~50 vregs live per chunk) while the DMA tile stays large.
    for c in range(tm // lane_chunk):
        lo, hi = c * lane_chunk, (c + 1) * lane_chunk
        xk = x_ref[0, :, lo:hi]                                     # (K*Cc, LC) bf16
        h = jnp.dot(wdf, xk, preferred_element_type=jnp.float32)    # (2*K*H0, LC) f32
        # ReLU each branch (conv_d rows first, conv_f rows second), operator '+'
        z = jnp.maximum(h[:KH0], 0.0) + jnp.maximum(h[KH0:], 0.0)   # (K*H0, LC) f32
        y = jnp.dot(w1, z.astype(jnp.bfloat16),
                    preferred_element_type=jnp.float32)             # (K*H1, LC) f32
        y = jnp.maximum(y, 0.0)
        # spatial 'max' pool over K: 7 maximums over 16-row (vreg-aligned) slices
        pooled = y[:H1]
        for k in range(1, K):
            pooled = jnp.maximum(pooled, y[k * H1:(k + 1) * H1])    # (H1, LC) f32

        # temporal 'sum' pooling into the resident output block (axis 1 is the
        # innermost/last grid axis, so the accumulator is valid).
        @pl.when(first)
        def _():
            out_ref[:, lo:hi] = pooled

        @pl.when(rest)
        def _():
            out_ref[:, lo:hi] += pooled


def _choose_tm(m_pad, tm_max=2048):
    """Largest multiple-of-128 tile dividing m_pad, preferring an EVEN number of
    tiles (v7x: 2 TensorCores shard the parallel axis); else largest divisor."""
    best_any, best_even = 128, None
    t = 128
    while t <= min(tm_max, m_pad):
        if m_pad % t == 0:
            best_any = t
            if (m_pad // t) % 2 == 0:
                best_even = t
        t += 128
    return best_even if best_even is not None else best_any


def fused_block_pallas(x_all, wdf_big, w1_big, *, K, H1, tm_max=2048):
    """x_all: (tk, K*Cc, M) bf16.  Returns (H1, M) f32 temporal-summed features."""
    tk, kcc, M = x_all.shape
    KH1, KH0 = w1_big.shape
    assert KH1 == K * H1

    m_pad = ((M + 127) // 128) * 128
    tm = _choose_tm(m_pad, tm_max)
    lane_chunk = 256 if tm % 256 == 0 else 128
    # Per grid step VMEM (double-buffered): ~2*(kcc*tm*2 + H1*tm*4) + weights;
    # at tm=2048 this is < 1 MiB, far under every generation's scoped limit.
    x = jnp.pad(x_all, ((0, 0), (0, 0), (0, m_pad - M))).astype(jnp.bfloat16)
    wdf = wdf_big.astype(jnp.bfloat16)
    w1 = w1_big.astype(jnp.bfloat16)

    kern = functools.partial(_p4d_kernel, KH0=KH0, H1=H1, K=K, lane_chunk=lane_chunk)
    out = pl.pallas_call(
        kern,
        out_shape=jax.ShapeDtypeStruct((H1, m_pad), jnp.float32),
        grid_spec=pltpu.PrefetchScalarGridSpec(
            num_scalar_prefetch=0,
            grid=(m_pad // tm, tk),                 # reduction (temporal) axis last
            in_specs=[
                pl.BlockSpec((1, kcc, tm), lambda i, j: (j, 0, i)),
                pl.BlockSpec(wdf.shape, lambda i, j: (0, 0)),
                pl.BlockSpec(w1.shape, lambda i, j: (0, 0)),
            ],
            out_specs=pl.BlockSpec((H1, tm), lambda i, j: (0, i)),
        ),
        compiler_params=pltpu.CompilerParams(
            dimension_semantics=("parallel", "arbitrary")),
    )(x, wdf, w1)
    return out[:, :M]


def fused_block_ref(x_all, wdf_big, w1_big, *, K, H1):
    """Pure-JAX reference of the fused path (same bf16 rounding of operands)."""
    x = x_all.astype(jnp.float32)
    wdf = wdf_big.astype(jnp.bfloat16).astype(jnp.float32)
    w1 = w1_big.astype(jnp.bfloat16).astype(jnp.float32)
    KH0 = w1_big.shape[1]
    h = jnp.einsum('oc,tcm->tom', wdf, x, precision='highest')
    z = jnp.maximum(h[:, :KH0], 0.0) + jnp.maximum(h[:, KH0:], 0.0)
    y = jnp.einsum('oc,tcm->tom', w1,
                   z.astype(jnp.bfloat16).astype(jnp.float32), precision='highest')
    y = jnp.maximum(y, 0.0)
    tk, _, M = y.shape
    y = y.reshape(tk, K, H1, M)
    y = jnp.max(y, axis=1)          # spatial 'max' over K
    return jnp.sum(y, axis=0)       # temporal 'sum'


# ---------------------------------------------------------------------------
# Glue: pointnet2-style furthest point sampling, ball query, grouping.
# (Data-dependent gathers; kept in plain JAX.)
# TODO(synk): for production sizes, move the grouping gather into the kernel via
# scalar-prefetched ball-query indices + manual make_async_copy, instead of
# materializing the grouped (tk, K*Cc, M) tensor in HBM (each source point is
# duplicated up to K times there).
# ---------------------------------------------------------------------------
def furthest_point_sample(xyz, npoint):
    """xyz: (B, N, 3) -> (B, npoint) int32 indices. Matches pointnet2 FPS."""
    B, N, _ = xyz.shape

    def body(i, state):
        idx, dists, last = state
        last_xyz = xyz[jnp.arange(B), last]                      # (B, 3)
        d = jnp.sum((xyz - last_xyz[:, None, :]) ** 2, axis=-1)  # (B, N)
        dists = jnp.minimum(dists, d)
        nxt = jnp.argmax(dists, axis=-1).astype(jnp.int32)
        idx = idx.at[:, i].set(nxt)
        return idx, dists, nxt

    idx0 = jnp.zeros((B, npoint), jnp.int32)
    dists0 = jnp.full((B, N), 1e10, jnp.float32)
    last0 = jnp.zeros((B,), jnp.int32)
    idx, _, _ = jax.lax.fori_loop(1, npoint, body, (idx0, dists0, last0))
    return idx


def ball_query(radius, nsample, xyz, new_xyz):
    """xyz: (B, N, 3) neighbors, new_xyz: (B, S, 3) anchors -> (B, S, nsample)."""
    d2 = jnp.sum((new_xyz[:, :, None, :] - xyz[:, None, :, :]) ** 2, axis=-1)
    within = d2 < radius * radius                                # (B, S, N)
    cum = jnp.cumsum(within.astype(jnp.int32), axis=-1)
    pos = cum - 1
    has_any = jnp.any(within, axis=-1)
    first_idx = jnp.argmax(within, axis=-1).astype(jnp.int32)

    slots = []
    for j in range(nsample):
        sel = within & (pos == j)
        exists = jnp.any(sel, axis=-1)
        idxj = jnp.argmax(sel, axis=-1).astype(jnp.int32)
        slots.append(jnp.where(exists, idxj, first_idx))
    idx = jnp.stack(slots, axis=-1)
    idx = jnp.where(has_any[..., None], idx, 0)
    return idx.astype(jnp.int32)


# ---------------------------------------------------------------------------
# Full P4DConv forward.
# ---------------------------------------------------------------------------
def p4dconv_forward(xyzs, features, params, cfg, fused_fn):
    """xyzs: (B, T, N, 3); features: (B, T, C_in, N).
    Returns (new_xyzs (B, T_out, NA, 3), new_features (B, T_out, C_out, NA))."""
    B, T, N, _ = xyzs.shape
    C_in = features.shape[2]
    r, K = cfg['r'], cfg['k']
    tk = cfg['temporal_kernel_size']
    pad_l, pad_r = cfg['temporal_padding']
    NA = N // cfg['spatial_stride']
    Cc = 4 + C_in
    H1 = params['w1_big'].shape[0] // K

    xyz_list = [xyzs[:, t] for t in range(T)]                                 # (B, N, 3)
    feat_list = [jnp.transpose(features[:, t], (0, 2, 1)) for t in range(T)]  # (B, N, C)
    # 'replicate' temporal padding
    for _ in range(pad_l):
        xyz_list = [xyz_list[0]] + xyz_list
        feat_list = [feat_list[0]] + feat_list
    for _ in range(pad_r):
        xyz_list = xyz_list + [xyz_list[-1]]
        feat_list = feat_list + [feat_list[-1]]

    bidx = jnp.arange(B)[:, None, None]
    centers = list(range(tk // 2, len(xyz_list) - tk // 2, cfg['temporal_stride']))
    T_out = len(centers)

    new_xyzs = []
    x_steps = [[] for _ in range(tk)]        # per temporal offset: list over t_out
    for t in centers:
        anchor_idx = furthest_point_sample(xyz_list[t], NA)                   # (B, NA)
        anchor_xyz = xyz_list[t][jnp.arange(B)[:, None], anchor_idx]          # (B, NA, 3)
        new_xyzs.append(anchor_xyz)
        for j in range(tk):
            i = t - tk // 2 + j
            nxyz = xyz_list[i]
            idx = ball_query(r, K, nxyz, anchor_xyz)                          # (B, NA, K)
            nxyz_g = nxyz[bidx, idx]                                          # (B, NA, K, 3)
            feat_g = feat_list[i][bidx, idx]                                  # (B, NA, K, C)
            disp = nxyz_g - anchor_xyz[:, :, None, :]                         # f32
            dt = jnp.full((B, NA, K, 1), float(i - t), jnp.float32)
            # channels = [dx, dy, dz, dt, feat...]; dt folded in as data.
            piece = jnp.concatenate([disp, dt, feat_g], axis=-1)              # (B,NA,K,Cc)
            # bf16 + channels-first, lane-dense layout built directly per piece.
            piece = piece.astype(jnp.bfloat16)
            piece = jnp.transpose(piece, (2, 3, 0, 1)).reshape(K * Cc, B * NA)
            x_steps[j].append(piece)

    # (tk, K*Cc, M) with M ordered (t_out, b, na)
    M = T_out * B * NA
    x_all = jnp.stack(
        [jnp.stack(s, axis=1).reshape(K * Cc, M) for s in x_steps], axis=0)

    feats = fused_fn(x_all, params['wdf_big'], params['w1_big'], K=K, H1=H1)  # (H1, M)
    feats = feats.reshape(H1, T_out, B, NA)
    new_features = jnp.transpose(feats, (2, 1, 0, 3))                         # (B,T_out,H1,NA)
    new_xyzs = jnp.stack(new_xyzs, axis=1)                                    # (B,T_out,NA,3)
    return new_xyzs, new_features


# TODO(synk): BatchNorm layers are configured off (mlp_batch_norm=[False, False]);
# training-mode batch statistics have no clean per-tile Pallas equivalent here.

if __name__ == "__main__":
    B, T, N, C_in = 2, 4, 64, 4
    H0, H1 = 8, 16
    K = 8
    Cc = 4 + C_in

    key = jax.random.PRNGKey(0)
    k1, k2, k3, k4, k5 = jax.random.split(key, 5)
    xyzs = jax.random.uniform(k1, (B, T, N, 3), jnp.float32)
    features = jax.random.normal(k2, (B, T, C_in, N), jnp.float32)

    # PyTorch conv weight (out,in,1,1) -> (in,out) matrices.
    Wd = jax.random.normal(k3, (4, H0), jnp.float32) * 0.3     # conv_d: [dx,dy,dz,dt]->H0
    Wf = jax.random.normal(k4, (C_in, H0), jnp.float32) * 0.3  # conv_f: C_in -> H0
    W1 = jax.random.normal(k5, (H0, H1), jnp.float32) * 0.3    # mlp:    H0   -> H1

    # K-batched block-diagonal weights (channels-first / transposed):
    #   stage 1: rows [all conv_d blocks | all conv_f blocks], cols = K blocks of
    #            [geom(4) | feat(C_in)] per neighbor -> (2*K*H0, K*Cc) = (128, 64)
    #   stage 2: K diagonal copies of W1^T -> (K*H1, K*H0) = (128, 64)
    eye_k = jnp.eye(K, dtype=jnp.float32)
    wd_blk = jnp.zeros((H0, Cc), jnp.float32).at[:, :4].set(Wd.T)
    wf_blk = jnp.zeros((H0, Cc), jnp.float32).at[:, 4:].set(Wf.T)
    wdf_big = jnp.concatenate(
        [jnp.kron(eye_k, wd_blk), jnp.kron(eye_k, wf_blk)], axis=0)
    w1_big = jnp.kron(eye_k, W1.T)
    params = dict(wdf_big=wdf_big, w1_big=w1_big)

    cfg = dict(r=0.9, k=K, spatial_stride=2, temporal_kernel_size=3,
               temporal_stride=1, temporal_padding=(1, 1))

    new_xyzs, new_feats = p4dconv_forward(xyzs, features, params, cfg,
                                          fused_fn=fused_block_pallas)
    jax.block_until_ready((new_xyzs, new_feats))

    # Correctness check against a pure-JAX reference of the fused path.
    ref_xyzs, ref_feats = p4dconv_forward(xyzs, features, params, cfg,
                                          fused_fn=fused_block_ref)
    np.testing.assert_allclose(np.asarray(new_xyzs), np.asarray(ref_xyzs),
                               rtol=1e-5, atol=1e-5)
    np.testing.assert_allclose(np.asarray(new_feats), np.asarray(ref_feats),
                               rtol=2e-2, atol=2e-2)

    NA = N // cfg['spatial_stride']
    assert new_xyzs.shape == (B, T, NA, 3)
    assert new_feats.shape == (B, T, H1, NA)
    print("KERNEL_OK")
</pallas_src>

<mosaic_0001>
module attributes {stable_mosaic.version = 11 : i64} {
  func.func @_p4d_kernel(%arg0: i32, %arg1: i32, %arg2: memref<1x64x128xbf16, #tpu.memory_space<vmem>>, %arg3: memref<128x64xbf16, #tpu.memory_space<vmem>>, %arg4: memref<128x64xbf16, #tpu.memory_space<vmem>>, %arg5: memref<16x128xf32, #tpu.memory_space<vmem>>) attributes {dimension_semantics = [#tpu.dimension_semantics<parallel>, #tpu.dimension_semantics<arbitrary>], iteration_bounds = array<i64: 2, 3>, scalar_prefetch = 0 : i64, scratch_operands = 0 : i64, tpu.core_type = #tpu.core_type<tc>, window_params = [{transform_indices = @transform_0, window_bounds = array<i64: 1, 64, 128>}, {pipeline_mode = #tpu.pipeline_mode<synchronous>, transform_indices = @transform_1, window_bounds = array<i64: 128, 64>}, {pipeline_mode = #tpu.pipeline_mode<synchronous>, transform_indices = @transform_2, window_bounds = array<i64: 128, 64>}, {transform_indices = @transform_3, window_bounds = array<i64: 16, 128>}]} {
    %c0 = arith.constant 0 : index
    %c0_0 = arith.constant 0 : index
    %0 = vector.load %arg3[%c0, %c0_0] : memref<128x64xbf16, #tpu.memory_space<vmem>>, vector<128x64xbf16>
    %c0_1 = arith.constant 0 : index
    %c0_2 = arith.constant 0 : index
    %1 = vector.load %arg4[%c0_1, %c0_2] : memref<128x64xbf16, #tpu.memory_space<vmem>>, vector<128x64xbf16>
    %c0_i32 = arith.constant 0 : i32
    %2 = arith.cmpi eq, %arg1, %c0_i32 : i32
    %c0_i32_3 = arith.constant 0 : i32
    %3 = arith.cmpi ne, %arg1, %c0_i32_3 : i32
    %c0_4 = arith.constant 0 : index
    %c0_5 = arith.constant 0 : index
    %c0_6 = arith.constant 0 : index
    %4 = vector.load %arg2[%c0_4, %c0_5, %c0_6] : memref<1x64x128xbf16, #tpu.memory_space<vmem>>, vector<1x64x128xbf16>
    %5 = vector.shape_cast %4 : vector<1x64x128xbf16> to vector<64x128xbf16>
    %cst = arith.constant dense<0.000000e+00> : vector<128x128xf32>
    %6 = tpu.matmul %0, %5, %cst {dimension_numbers = #tpu.dot_dimension_numbers<[1], [0], [0], [1], [0, 0, 1, 1], [], []>} : vector<128x64xbf16>, vector<64x128xbf16>, vector<128x128xf32> -> vector<128x128xf32>
    %7 = vector.extract_strided_slice %6 {offsets = [0, 0], sizes = [64, 128], strides = [1, 1]} : vector<128x128xf32> to vector<64x128xf32>
    %cst_7 = arith.constant 0.000000e+00 : f32
    %8 = vector.broadcast %cst_7 : f32 to vector<64x128xf32>
    %9 = arith.maximumf %7, %8 : vector<64x128xf32>
    %10 = vector.extract_strided_slice %6 {offsets = [64, 0], sizes = [64, 128], strides = [1, 1]} : vector<128x128xf32> to vector<64x128xf32>
    %cst_8 = arith.constant 0.000000e+00 : f32
    %11 = vector.broadcast %cst_8 : f32 to vector<64x128xf32>
    %12 = arith.maximumf %10, %11 : vector<64x128xf32>
    %13 = arith.addf %9, %12 : vector<64x128xf32>
    %14 = arith.truncf %13 : vector<64x128xf32> to vector<64x128xbf16>
    %cst_9 = arith.constant dense<0.000000e+00> : vector<128x128xf32>
    %15 = tpu.matmul %1, %14, %cst_9 {dimension_numbers = #tpu.dot_dimension_numbers<[1], [0], [0], [1], [0, 0, 1, 1], [], []>} : vector<128x64xbf16>, vector<64x128xbf16>, vector<128x128xf32> -> vector<128x128xf32>
    %cst_10 = arith.constant 0.000000e+00 : f32
    %16 = vector.broadcast %cst_10 : f32 to vector<128x128xf32>
    %17 = arith.maximumf %15, %16 : vector<128x128xf32>
    %18 = vector.extract_strided_slice %17 {offsets = [0, 0], sizes = [16, 128], strides = [1, 1]} : vector<128x128xf32> to vector<16x128xf32>
    %19 = vector.extract_strided_slice %17 {offsets = [16, 0], sizes = [16, 128], strides = [1, 1]} : vector<128x128xf32> to vector<16x128xf32>
    %20 = arith.maximumf %18, %19 : vector<16x128xf32>
    %21 = vector.extract_strided_slice %17 {offsets = [32, 0], sizes = [16, 128], strides = [1, 1]} : vector<128x128xf32> to vector<16x128xf32>
    %22 = arith.maximumf %20, %21 : vector<16x128xf32>
    %23 = vector.extract_strided_slice %17 {offsets = [48, 0], sizes = [16, 128], strides = [1, 1]} : vector<128x128xf32> to vector<16x128xf32>
    %24 = arith.maximumf %22, %23 : vector<16x128xf32>
    %25 = vector.extract_strided_slice %17 {offsets = [64, 0], sizes = [16, 128], strides = [1, 1]} : vector<128x128xf32> to vector<16x128xf32>
    %26 = arith.maximumf %24, %25 : vector<16x128xf32>
    %27 = vector.extract_strided_slice %17 {offsets = [80, 0], sizes = [16, 128], strides = [1, 1]} : vector<128x128xf32> to vector<16x128xf32>
    %28 = arith.maximumf %26, %27 : vector<16x128xf32>
    %29 = vector.extract_strided_slice %17 {offsets = [96, 0], sizes = [16, 128], strides = [1, 1]} : vector<128x128xf32> to vector<16x128xf32>
    %30 = arith.maximumf %28, %29 : vector<16x128xf32>
    %31 = vector.extract_strided_slice %17 {offsets = [112, 0], sizes = [16, 128], strides = [1, 1]} : vector<128x128xf32> to vector<16x128xf32>
    %32 = arith.maximumf %30, %31 : vector<16x128xf32>
    %33 = arith.extui %2 : i1 to i32
    %c0_i32_11 = arith.constant 0 : i32
    %34 = arith.cmpi ne, %33, %c0_i32_11 : i32
    scf.if %34 {
      %c0_13 = arith.constant 0 : index
      %c0_14 = arith.constant 0 : index
      %37 = vector.load %arg5[%c0_13, %c0_14] : memref<16x128xf32, #tpu.memory_space<vmem>>, vector<16x128xf32>
      tpu.vector_store %arg5[%c0_13, %c0_14], %32 {strides = array<i32>} : memref<16x128xf32, #tpu.memory_space<vmem>>, vector<16x128xf32>,
    } else {
    }
    %35 = arith.extui %3 : i1 to i32
    %c0_i32_12 = arith.constant 0 : i32
    %36 = arith.cmpi ne, %35, %c0_i32_12 : i32
    scf.if %36 {
      %c0_13 = arith.constant 0 : index
      %c0_14 = arith.constant 0 : index
      %37 = vector.load %arg5[%c0_13, %c0_14] : memref<16x128xf32, #tpu.memory_space<vmem>>, vector<16x128xf32>
      %38 = arith.addf %37, %32 : vector<16x128xf32>
      %c0_15 = arith.constant 0 : index
      %c0_16 = arith.constant 0 : index
      %39 = vector.load %arg5[%c0_15, %c0_16] : memref<16x128xf32, #tpu.memory_space<vmem>>, vector<16x128xf32>
      tpu.vector_store %arg5[%c0_15, %c0_16], %38 {strides = array<i32>} : memref<16x128xf32, #tpu.memory_space<vmem>>, vector<16x128xf32>,
    } else {
    }
    return
  }
  func.func @transform_0(%arg0: i32, %arg1: i32) -> (i32, i32, i32) {
    %c0_i32 = arith.constant 0 : i32
    %c0_i32_0 = arith.constant 0 : i32
    return %arg1, %c0_i32, %arg0 : i32, i32, i32
  }
  func.func @transform_1(%arg0: i32, %arg1: i32) -> (i32, i32) {
    %c0_i32 = arith.constant 0 : i32
    %c0_i32_0 = arith.constant 0 : i32
    %c0_i32_1 = arith.constant 0 : i32
    return %c0_i32, %c0_i32_0 : i32, i32
  }
  func.func @transform_2(%arg0: i32, %arg1: i32) -> (i32, i32) {
    %c0_i32 = arith.constant 0 : i32
    %c0_i32_0 = arith.constant 0 : i32
    %c0_i32_1 = arith.constant 0 : i32
    return %c0_i32, %c0_i32_0 : i32, i32
  }
  func.func @transform_3(%arg0: i32, %arg1: i32) -> (i32, i32) {
    %c0_i32 = arith.constant 0 : i32
    %c0_i32_0 = arith.constant 0 : i32
    return %c0_i32, %arg0 : i32, i32
  }
}

</mosaic_0001>

<llo_original>
// kernel: tpu_custom_call.1
$region0: #{tpu_custom_call.1}
  #allocation0 [shape = 'u32[]', space=smem, size = 0x4, offset = 0x4, fixed_abs, tag = 'smem constant byte address 0x4 - core index']
  #allocation1 [shape = 'u32[72,128]{1,0:T(1,128)}', space=vmem, size = 0x9000, scoped, tag = 'internal scratch']
  %s0 = inlined_call_operand.hbm [shape: bf16[3,64,256], index: 0, kind: input, shape index: {}]
  %s1 = inlined_call_operand.vmem [shape: bf16[128,64], index: 1, kind: input, shape index: {}]
  %s2 = inlined_call_operand.vmem [shape: bf16[128,64], index: 2, kind: input, shape index: {}]
  %s3 = inlined_call_operand.hbm [shape: f32[16,256], index: 3, kind: output, shape index: {}]
  %s4 = sld [smem:[#allocation0]]
  $region57: #{tpu_custom_call.1} parent=0
    _
  %s6 = ssub.s32 1, %s4
  %s7 = scalar_select 0, %s6, %s4
  $region1: #{tpu_custom_call.1} parent=0
    #allocation2 [shape = 'u8[32768]{0}', space=vmem, size = 0x8000, scoped, tag = 'input window, operand 0']
    #allocation3 [shape = 's32[2]{0}', space=sflag, size = 0x8, scoped, tag = 'scoped memory for tpu_custom_call.1']
    #allocation4 [shape = 's32[2]{0}', space=sflag, size = 0x8, scoped, tag = 'scoped memory for tpu_custom_call.1']
    #allocation5 [shape = 'u8[16384]{0}', space=vmem, size = 0x4000, scoped, tag = 'output window, operand 0']
    %8 = vsyncpa [#allocation3], 0
    %s9 = scalar_lea.sflag [#allocation3], 1
    %10 = vsyncpa %s9, 0
    %11 = vsyncpa [#allocation4], 0
    %s12 = scalar_lea.sflag [#allocation4], 1
    %13 = vsyncpa %s12, 0
    loop: start=0, step=1, limit=8
    $region2: #{tpu_custom_call.1} parent=1 // loop_pre_header
      _
    $region3: #{tpu_custom_call.1} parent=1 // loop_header
      %s15 = sphi 0, %s19
      %p16 = scmp.ge.s32.totalorder %s15, 8
      %s22 = sphi 0, %s34
      %s23 = sphi 0, %s30
      %s24 = sphi 0, %s22
      %s25 = sphi 0, %s23
      %s26 = sphi 0, %s24
      %s27 = sphi 0, %s25
      %s39 = sphi 0, %s41
      %s42 = sphi 0, %s39
      %s43 = sphi 0, %s42
      %s59 = sphi 0, %s43
      %s63 = sphi 0, %s63
      %s65 = sphi 0, %s63
      %s66 = sphi 0, %s65
      %s80 = sphi 0, %s66
      %s84 = sphi 0, %s84
      %s86 = sphi 0, %s84
      %s87 = sphi 0, %s86
      %s101 = sphi 0, %s87
      %s107 = sphi 0, %s109
      %s110 = sphi 0, %s107
      %s111 = sphi 0, %s110
      %s127 = sphi 0, %s111
    $region4: #{tpu_custom_call.1} parent=1 // loop_header_branch
      %18 = sbr.rel (%p16) target = $region8
    $region5: #{tpu_custom_call.1} parent=1 // loop_body
      %s20 = ssub.s32 %s15, 1
      %s21 = ssub.s32 %s15, 2
      %s28 = sadd.s32 1, %s23
      %p29 = scmp.ge.s32.totalorder %s28, 3
      %s30 = scalar_select %p29, 0, %s28
      %s31 = sadd.s32 1, %s22
      %s32 = scalar_select %p29, %s31, %s22
      %p33 = scmp.ge.s32.totalorder %s32, 2
      %s34 = scalar_select %p33, 0, %s32
      %s35 = ssub.s32 %s23, %s30
      %s36 = ssub.s32 %s22, %s34
      %s37 = sor.u32 %s35, %s36
      %p38 = scmp.eq.s32.totalorder %s37, 0
      %s40 = sadd.s32 %s39, 1
      %s41 = scalar_select %p38, %s39, %s40
      %p44 = pneg %p38
      %p45 = scmp.eq.s32.totalorder %s15, 5
      %p46 = por %p44, %p45
      %p47 = scmp.ne.s32.totalorder %s39, %s42
      %p48 = scmp.eq.s32.totalorder %s15, 0
      %p49 = por %p47, %p48
      %p50 = scmp.ne.s32.totalorder %s39, %s42
      %p51 = scmp.eq.s32.totalorder %s20, 5
      %p52 = por %p50, %p51
      %p53 = scmp.ne.s32.totalorder %s42, %s43
      %p54 = scmp.eq.s32.totalorder %s20, 0
      %p55 = por %p53, %p54
      %p56 = scmp.ne.s32.totalorder %s42, %s43
      %p57 = scmp.eq.s32.totalorder %s21, 5
      %p58 = por %p56, %p57
      %p60 = scmp.ne.s32.totalorder %s43, %s59
      %p61 = scmp.eq.s32.totalorder %s21, 0
      %p62 = por %p60, %p61
      %s64 = sadd.s32 %s63, 1
      %p67 = scmp.eq.s32.totalorder %s15, 5
      %p68 = scmp.ne.s32.totalorder %s63, %s65
      %p69 = scmp.eq.s32.totalorder %s15, 0
      %p70 = por %p68, %p69
      %p71 = scmp.ne.s32.totalorder %s63, %s65
      %p72 = scmp.eq.s32.totalorder %s20, 5
      %p73 = por %p71, %p72
      %p74 = scmp.ne.s32.totalorder %s65, %s66
      %p75 = scmp.eq.s32.totalorder %s20, 0
      %p76 = por %p74, %p75
      %p77 = scmp.ne.s32.totalorder %s65, %s66
      %p78 = scmp.eq.s32.totalorder %s21, 5
      %p79 = por %p77, %p78
      %p81 = scmp.ne.s32.totalorder %s66, %s80
      %p82 = scmp.eq.s32.totalorder %s21, 0
      %p83 = por %p81, %p82
      %s85 = sadd.s32 %s84, 1
      %p88 = scmp.eq.s32.totalorder %s15, 5
      %p89 = scmp.ne.s32.totalorder %s84, %s86
      %p90 = scmp.eq.s32.totalorder %s15, 0
      %p91 = por %p89, %p90
      %p92 = scmp.ne.s32.totalorder %s84, %s86
      %p93 = scmp.eq.s32.totalorder %s20, 5
      %p94 = por %p92, %p93
      %p95 = scmp.ne.s32.totalorder %s86, %s87
      %p96 = scmp.eq.s32.totalorder %s20, 0
      %p97 = por %p95, %p96
      %p98 = scmp.ne.s32.totalorder %s86, %s87
      %p99 = scmp.eq.s32.totalorder %s21, 5
      %p100 = por %p98, %p99
      %p102 = scmp.ne.s32.totalorder %s87, %s101
      %p103 = scmp.eq.s32.totalorder %s21, 0
      %p104 = por %p102, %p103
      %s105 = ssub.s32 %s22, %s34
      %p106 = scmp.eq.s32.totalorder %s105, 0
      %s108 = sadd.s32 %s107, 1
      %s109 = scalar_select %p106, %s107, %s108
      %p112 = pneg %p106
      %p113 = scmp.eq.s32.totalorder %s15, 5
      %p114 = por %p112, %p113
      %p115 = scmp.ne.s32.totalorder %s107, %s110
      %p116 = scmp.eq.s32.totalorder %s15, 0
      %p117 = por %p115, %p116
      %p118 = scmp.ne.s32.totalorder %s107, %s110
      %p119 = scmp.eq.s32.totalorder %s20, 5
      %p120 = por %p118, %p119
      %p121 = scmp.ne.s32.totalorder %s110, %s111
      %p122 = scmp.eq.s32.totalorder %s20, 0
      %p123 = por %p121, %p122
      %p124 = scmp.ne.s32.totalorder %s110, %s111
      %p125 = scmp.eq.s32.totalorder %s21, 5
      %p126 = por %p124, %p125
      %p128 = scmp.ne.s32.totalorder %s111, %s127
      %p129 = scmp.eq.s32.totalorder %s21, 0
      %p130 = por %p128, %p129
      %p131 = scmp.le.s32.totalorder 1, %s15
      %p132 = scmp.lt.s32.totalorder %s15, 7
      %p133 = pnand %p131, %p132
      %p134 = pneg %p133
      // Predicated region
      $region9: #{tpu_custom_call.1} parent=5 // pred_check
        _
      $region10: #{tpu_custom_call.1} parent=5 // pred_check_branch
        %136 = sbr.rel (%p133) target = $region12
      $region11: #{tpu_custom_call.1} parent=5 // pred_region
        %s137 = ssub.s32 %s15, 1
        // Predicated region
        $region13: #{tpu_custom_call.1} parent=11 // pred_check
          %p138 = pneg %p76
        $region14: #{tpu_custom_call.1} parent=11 // pred_check_branch
          %140 = sbr.rel (%p138) target = $region16
        $region15: #{tpu_custom_call.1} parent=11 // pred_region
          _
        $region16: #{tpu_custom_call.1} parent=11 // pred_fallthru
          _
        // Predicated region
        $region17: #{tpu_custom_call.1} parent=11 // pred_check
          %p141 = pneg %p97
        $region18: #{tpu_custom_call.1} parent=11 // pred_check_branch
          %143 = sbr.rel (%p141) target = $region20
        $region19: #{tpu_custom_call.1} parent=11 // pred_region
          _
        $region20: #{tpu_custom_call.1} parent=11 // pred_fallthru
          _
      $region12: #{tpu_custom_call.1} parent=5 // pred_fallthru
        _
      %p144 = scmp.lt.s32.totalorder %s15, 6
      // Predicated region
      $region21: #{tpu_custom_call.1} parent=5 // pred_check
        %p145 = pneg %p144
      $region22: #{tpu_custom_call.1} parent=5 // pred_check_branch
        %147 = sbr.rel (%p145) target = $region24
      $region23: #{tpu_custom_call.1} parent=5 // pred_region
        // Predicated region
        $region25: #{tpu_custom_call.1} parent=23 // pred_check
          %p148 = pneg %p49
        $region26: #{tpu_custom_call.1} parent=23 // pred_check_branch
          %150 = sbr.rel (%p148) target = $region28
        $region27: #{tpu_custom_call.1} parent=23 // pred_region
          %s151 = sand.u32 %s39, 1
          %s152 = scalar_lea.sflag [#allocation3], %s151
          %s153 = sand.u32 %s39, 1
          %s154 = smul.addr %s153, 32
          %s155 = scalar_lea.vmem [#allocation2], %s154
          %157 = vsyncadd %s152, 0
          %s158 = smul.addr %s23, 16
          %s159 = sadd.s32 %s22, %s158
          %s160 = smul.addr %s159, 4
          %s161 = scalar_lea.hbm %s0, %s160
          %s162 = sshll.u32 %s161, 4
          %s163 = int_to_ptr.hbm [resolvable:$true] %s162
          %s164 = sshll.u32 %s155, 4
          %s165 = int_to_ptr.vmem [resolvable:$true] %s164
          %170 = dma.hbm_to_vmem [thread:$0]  %s163, 512, %s165, %s152, 128, 64, 4
        $region28: #{tpu_custom_call.1} parent=23 // pred_fallthru
          _
      $region24: #{tpu_custom_call.1} parent=5 // pred_fallthru
        _
      %p171 = scmp.le.s32.totalorder 1, %s15
      %p172 = scmp.lt.s32.totalorder %s15, 7
      %p173 = pnand %p171, %p172
      %p174 = pneg %p173
      // Predicated region
      $region29: #{tpu_custom_call.1} parent=5 // pred_check
        _
      $region30: #{tpu_custom_call.1} parent=5 // pred_check_branch
        %176 = sbr.rel (%p173) target = $region32
      $region31: #{tpu_custom_call.1} parent=5 // pred_region
        %s177 = ssub.s32 %s15, 1
        %s178 = sand.u32 %s42, 1
        %s179 = scalar_lea.sflag [#allocation3], %s178
        %s180 = sand.u32 %s42, 1
        %s181 = smul.addr %s180, 32
        %s182 = scalar_lea.vmem [#allocation2], %s181
        // Predicated region
        $region33: #{tpu_custom_call.1} parent=31 // pred_check
          %p183 = pneg %p55
        $region34: #{tpu_custom_call.1} parent=31 // pred_check_branch
          %185 = sbr.rel (%p183) target = $region36
        $region35: #{tpu_custom_call.1} parent=31 // pred_region
          %187 = dma.done %s179, 512
        $region36: #{tpu_custom_call.1} parent=31 // pred_fallthru
          _
        %s188 = sand.u32 %s42, 1
        %s189 = scalar_lea.sflag [#allocation3], %s188
        %s190 = sand.u32 %s42, 1
        %s191 = smul.addr %s190, 32
        %s192 = scalar_lea.vmem [#allocation2], %s191
        %p193 = pneg %p55
        %p194 = pneg %p52
        %p195 = pneg %p76
        %p196 = pneg %p73
        %p197 = pneg %p97
        %p198 = pneg %p94
        %p199 = pneg %p123
        %p200 = pneg %p120
        %s201 = sand.u32 %s110, 1
        %s202 = scalar_lea.sflag [#allocation4], %s201
        %s203 = sand.u32 %s110, 1
        %s204 = smul.addr %s203, 16
        %s205 = scalar_lea.vmem [#allocation5], %s204
        %v207 = vld [vmem:[%s1] sm:$0xf]
        %v208 = vld [vmem:[%s1 + $0x4] sm:$0xf]
        %v209 = vld [vmem:[%s1 + $0x8] sm:$0xf]
        %v210 = vld [vmem:[%s1 + $0xc] sm:$0xf]
        %v211 = vld [vmem:[%s1 + $0x10] sm:$0xf]
        %v212 = vld [vmem:[%s1 + $0x14] sm:$0xf]
        %v213 = vld [vmem:[%s1 + $0x18] sm:$0xf]
        %v214 = vld [vmem:[%s1 + $0x1c] sm:$0xf]
        %v215 = vld [vmem:[%s1 + $0x20] sm:$0xf]
        %v216 = vld [vmem:[%s1 + $0x24] sm:$0xf]
        %v217 = vld [vmem:[%s1 + $0x28] sm:$0xf]
        %v218 = vld [vmem:[%s1 + $0x2c] sm:$0xf]
        %v219 = vld [vmem:[%s1 + $0x30] sm:$0xf]
        %v220 = vld [vmem:[%s1 + $0x34] sm:$0xf]
        %v221 = vld [vmem:[%s1 + $0x38] sm:$0xf]
        %v222 = vld [vmem:[%s1 + $0x3c] sm:$0xf]
        %v223 = vld [vmem:[%s2] sm:$0xf]
        %v224 = vld [vmem:[%s2 + $0x4] sm:$0xf]
        %v225 = vld [vmem:[%s2 + $0x8] sm:$0xf]
        %v226 = vld [vmem:[%s2 + $0xc] sm:$0xf]
        %v227 = vld [vmem:[%s2 + $0x10] sm:$0xf]
        %v228 = vld [vmem:[%s2 + $0x14] sm:$0xf]
        %v229 = vld [vmem:[%s2 + $0x18] sm:$0xf]
        %v230 = vld [vmem:[%s2 + $0x1c] sm:$0xf]
        %v231 = vld [vmem:[%s2 + $0x20] sm:$0xf]
        %v232 = vld [vmem:[%s2 + $0x24] sm:$0xf]
        %v233 = vld [vmem:[%s2 + $0x28] sm:$0xf]
        %v234 = vld [vmem:[%s2 + $0x2c] sm:$0xf]
        %v235 = vld [vmem:[%s2 + $0x30] sm:$0xf]
        %v236 = vld [vmem:[%s2 + $0x34] sm:$0xf]
        %v237 = vld [vmem:[%s2 + $0x38] sm:$0xf]
        %v238 = vld [vmem:[%s2 + $0x3c] sm:$0xf]
        %p239 = scmp.eq.s32.totalorder %s25, 0
        %p240 = scmp.ne.s32.totalorder %s25, 0
        %v241 = vld [vmem:[%s182] sm:$0xf]
        %v242 = vld [vmem:[%s182 + $0x4] sm:$0xf]
        %v243 = vld [vmem:[%s182 + $0x8] sm:$0xf]
        %v244 = vld [vmem:[%s182 + $0xc] sm:$0xf]
        %v245 = vld [vmem:[%s182 + $0x10] sm:$0xf]
        %v246 = vld [vmem:[%s182 + $0x14] sm:$0xf]
        %v247 = vld [vmem:[%s182 + $0x18] sm:$0xf]
        %v248 = vld [vmem:[%s182 + $0x1c] sm:$0xf]
        %v265 = vunpack.c.l.b16 %v207
        %v266 = vunpack.c.l.b16 %v208
        %v267 = vunpack.c.l.b16 %v209
        %v268 = vunpack.c.l.b16 %v210
        %v269 = vunpack.c.l.b16 %v211
        %v270 = vunpack.c.l.b16 %v212
        %v271 = vunpack.c.l.b16 %v213
        %v272 = vunpack.c.l.b16 %v214
        %v273 = vunpack.c.l.b16 %v215
        %v274 = vunpack.c.l.b16 %v216
        %v275 = vunpack.c.l.b16 %v217
        %v276 = vunpack.c.l.b16 %v218
        %v277 = vunpack.c.l.b16 %v219
        %v278 = vunpack.c.l.b16 %v220
        %v279 = vunpack.c.l.b16 %v221
        %v280 = vunpack.c.l.b16 %v222
        %v281 = vpack.c.b16 %v266, %v265
        %v282 = vpack.c.b16 %v268, %v267
        %v283 = vpack.c.b16 %v270, %v269
        %v284 = vpack.c.b16 %v272, %v271
        %v285 = vpack.c.b16 %v274, %v273
        %v286 = vpack.c.b16 %v276, %v275
        %v287 = vpack.c.b16 %v278, %v277
        %v288 = vpack.c.b16 %v280, %v279
        %v297 = vunpack.c.l.b16 %v241
        %v298 = vunpack.c.l.b16 %v242
        %v299 = vunpack.c.l.b16 %v243
        %v300 = vunpack.c.l.b16 %v244
        %v301 = vunpack.c.l.b16 %v245
        %v302 = vunpack.c.l.b16 %v246
        %v303 = vunpack.c.l.b16 %v247
        %v304 = vunpack.c.l.b16 %v248
        %v305 = vpack.c.b16 %v298, %v297
        %v306 = vpack.c.b16 %v300, %v299
        %v307 = vpack.c.b16 %v302, %v301
        %v308 = vpack.c.b16 %v304, %v303
        %vm313 = vcmask 523264
        %v315 = vsel %vm313, %v281, 0
        %v318 = vsel %vm313, %v282, 0
        %v321 = vsel %vm313, %v283, 0
        %v324 = vsel %vm313, %v284, 0
        %v327 = vsel %vm313, %v285, 0
        %v330 = vsel %vm313, %v286, 0
        %v333 = vsel %vm313, %v287, 0
        %v336 = vsel %vm313, %v288, 0
        %338 = vmatpush.bf16.msra.mxu0 0
        %339 = vmatpush.bf16.msra.mxu0 0
        %340 = vmatpush.bf16.msra.mxu0 0
        %341 = vmatpush.bf16.msra.mxu0 0
        %342 = vmatpush.bf16.msra.mxu0 %v308
        %343 = vmatpush.bf16.msra.mxu0 %v307
        %344 = vmatpush.bf16.msra.mxu0 %v306
        %345 = vmatpush.bf16.msra.mxu0 %v305
        %346 = vmatmul.bf16.gmra.mxu0 %v315
        %v347 = vpop.f32.mrf.mxu0
        %v348 = vadd.f32 0.0, %v347
        %v349 = vpop.f32.mrf.mxu0
        %v350 = vadd.f32 0.0, %v349
        %351 = vmatmul.bf16.gmra.mxu0 %v318
        %v352 = vpop.f32.mrf.mxu0
        %v353 = vadd.f32 0.0, %v352
        %v354 = vpop.f32.mrf.mxu0
        %v355 = vadd.f32 0.0, %v354
        %356 = vmatmul.bf16.gmra.mxu0 %v321
        %v357 = vpop.f32.mrf.mxu0
        %v358 = vadd.f32 0.0, %v357
        %v359 = vpop.f32.mrf.mxu0
        %v360 = vadd.f32 0.0, %v359
        %361 = vmatmul.bf16.gmra.mxu0 %v324
        %v362 = vpop.f32.mrf.mxu0
        %v363 = vadd.f32 0.0, %v362
        %v364 = vpop.f32.mrf.mxu0
        %v365 = vadd.f32 0.0, %v364
        %366 = vmatmul.bf16.gmra.mxu0 %v327
        %v367 = vpop.f32.mrf.mxu0
        %v368 = vadd.f32 0.0, %v367
        %v369 = vpop.f32.mrf.mxu0
        %v370 = vadd.f32 0.0, %v369
        %371 = vmatmul.bf16.gmra.mxu0 %v330
        %v372 = vpop.f32.mrf.mxu0
        %v373 = vadd.f32 0.0, %v372
        %v374 = vpop.f32.mrf.mxu0
        %v375 = vadd.f32 0.0, %v374
        %376 = vmatmul.bf16.gmra.mxu0 %v333
        %v377 = vpop.f32.mrf.mxu0
        %v378 = vadd.f32 0.0, %v377
        %v379 = vpop.f32.mrf.mxu0
        %v380 = vadd.f32 0.0, %v379
        %381 = vmatmul.bf16.gmra.mxu0 %v336
        %v382 = vpop.f32.mrf.mxu0
        %v383 = vadd.f32 0.0, %v382
        %v384 = vpop.f32.mrf.mxu0
        %v385 = vadd.f32 0.0, %v384
        %386 = vdwg.mxu0
        %v387 = vmax.f32 %v348, 0.0
        %v388 = vmax.f32 %v350, 0.0
        %v389 = vmax.f32 %v353, 0.0
        %v390 = vmax.f32 %v355, 0.0
        %v391 = vmax.f32 %v358, 0.0
        %v392 = vmax.f32 %v360, 0.0
        %v393 = vmax.f32 %v363, 0.0
        %v394 = vmax.f32 %v365, 0.0
        %v395 = vmax.f32 %v368, 0.0
        %v396 = vmax.f32 %v370, 0.0
        %v397 = vmax.f32 %v373, 0.0
        %v398 = vmax.f32 %v375, 0.0
        %v399 = vmax.f32 %v378, 0.0
        %v400 = vmax.f32 %v380, 0.0
        %v401 = vmax.f32 %v383, 0.0
        %v402 = vmax.f32 %v385, 0.0
        %v403 = vadd.f32 %v387, %v395
        %v404 = vadd.f32 %v388, %v396
        %v405 = vadd.f32 %v389, %v397
        %v406 = vadd.f32 %v390, %v398
        %v407 = vadd.f32 %v391, %v399
        %v408 = vadd.f32 %v392, %v400
        %v409 = vadd.f32 %v393, %v401
        %v410 = vadd.f32 %v394, %v402
        %v411 = vpack.c.bf16 %v404, %v403
        %v412 = vpack.c.bf16 %v406, %v405
        %v413 = vpack.c.bf16 %v408, %v407
        %v414 = vpack.c.bf16 %v410, %v409
        %v431 = vunpack.c.l.b16 %v223
        %v432 = vunpack.c.l.b16 %v224
        %v433 = vunpack.c.l.b16 %v225
        %v434 = vunpack.c.l.b16 %v226
        %v435 = vunpack.c.l.b16 %v227
        %v436 = vunpack.c.l.b16 %v228
        %v437 = vunpack.c.l.b16 %v229
        %v438 = vunpack.c.l.b16 %v230
        %v439 = vunpack.c.l.b16 %v231
        %v440 = vunpack.c.l.b16 %v232
        %v441 = vunpack.c.l.b16 %v233
        %v442 = vunpack.c.l.b16 %v234
        %v443 = vunpack.c.l.b16 %v235
        %v444 = vunpack.c.l.b16 %v236
        %v445 = vunpack.c.l.b16 %v237
        %v446 = vunpack.c.l.b16 %v238
        %v447 = vpack.c.b16 %v432, %v431
        %v448 = vpack.c.b16 %v434, %v433
        %v449 = vpack.c.b16 %v436, %v435
        %v450 = vpack.c.b16 %v438, %v437
        %v451 = vpack.c.b16 %v440, %v439
        %v452 = vpack.c.b16 %v442, %v441
        %v453 = vpack.c.b16 %v444, %v443
        %v454 = vpack.c.b16 %v446, %v445
        %v456 = vsel %vm313, %v447, 0
        %v459 = vsel %vm313, %v448, 0
        %v462 = vsel %vm313, %v449, 0
        %v465 = vsel %vm313, %v450, 0
        %v468 = vsel %vm313, %v451, 0
        %v471 = vsel %vm313, %v452, 0
        %v474 = vsel %vm313, %v453, 0
        %v477 = vsel %vm313, %v454, 0
        %479 = vmatpush.bf16.msra.mxu0 0
        %480 = vmatpush.bf16.msra.mxu0 0
        %481 = vmatpush.bf16.msra.mxu0 0
        %482 = vmatpush.bf16.msra.mxu0 0
        %483 = vmatpush.bf16.msra.mxu0 %v414
        %484 = vmatpush.bf16.msra.mxu0 %v413
        %485 = vmatpush.bf16.msra.mxu0 %v412
        %486 = vmatpush.bf16.msra.mxu0 %v411
        %487 = vmatmul.bf16.gmra.mxu0 %v456
        %v488 = vpop.f32.mrf.mxu0
        %v489 = vadd.f32 0.0, %v488
        %v490 = vpop.f32.mrf.mxu0
        %v491 = vadd.f32 0.0, %v490
        %492 = vmatmul.bf16.gmra.mxu0 %v459
        %v493 = vpop.f32.mrf.mxu0
        %v494 = vadd.f32 0.0, %v493
        %v495 = vpop.f32.mrf.mxu0
        %v496 = vadd.f32 0.0, %v495
        %497 = vmatmul.bf16.gmra.mxu0 %v462
        %v498 = vpop.f32.mrf.mxu0
        %v499 = vadd.f32 0.0, %v498
        %v500 = vpop.f32.mrf.mxu0
        %v501 = vadd.f32 0.0, %v500
        %502 = vmatmul.bf16.gmra.mxu0 %v465
        %v503 = vpop.f32.mrf.mxu0
        %v504 = vadd.f32 0.0, %v503
        %v505 = vpop.f32.mrf.mxu0
        %v506 = vadd.f32 0.0, %v505
        %507 = vmatmul.bf16.gmra.mxu0 %v468
        %v508 = vpop.f32.mrf.mxu0
        %v509 = vadd.f32 0.0, %v508
        %v510 = vpop.f32.mrf.mxu0
        %v511 = vadd.f32 0.0, %v510
        %512 = vmatmul.bf16.gmra.mxu0 %v471
        %v513 = vpop.f32.mrf.mxu0
        %v514 = vadd.f32 0.0, %v513
        %v515 = vpop.f32.mrf.mxu0
        %v516 = vadd.f32 0.0, %v515
        %517 = vmatmul.bf16.gmra.mxu0 %v474
        %v518 = vpop.f32.mrf.mxu0
        %v519 = vadd.f32 0.0, %v518
        %v520 = vpop.f32.mrf.mxu0
        %v521 = vadd.f32 0.0, %v520
        %522 = vmatmul.bf16.gmra.mxu0 %v477
        %v523 = vpop.f32.mrf.mxu0
        %v524 = vadd.f32 0.0, %v523
        %v525 = vpop.f32.mrf.mxu0
        %v526 = vadd.f32 0.0, %v525
        %527 = vdwg.mxu0
        %v528 = vmax.f32 %v489, 0.0
        %v529 = vmax.f32 %v491, 0.0
        %v530 = vmax.f32 %v494, 0.0
        %v531 = vmax.f32 %v496, 0.0
        %v532 = vmax.f32 %v499, 0.0
        %v533 = vmax.f32 %v501, 0.0
        %v534 = vmax.f32 %v504, 0.0
        %v535 = vmax.f32 %v506, 0.0
        %v536 = vmax.f32 %v509, 0.0
        %v537 = vmax.f32 %v511, 0.0
        %v538 = vmax.f32 %v514, 0.0
        %v539 = vmax.f32 %v516, 0.0
        %v540 = vmax.f32 %v519, 0.0
        %v541 = vmax.f32 %v521, 0.0
        %v542 = vmax.f32 %v524, 0.0
        %v543 = vmax.f32 %v526, 0.0
        %v544 = vmax.f32 %v528, %v530
        %v545 = vmax.f32 %v529, %v531
        %v546 = vmax.f32 %v544, %v532
        %v547 = vmax.f32 %v545, %v533
        %v548 = vmax.f32 %v546, %v534
        %v549 = vmax.f32 %v547, %v535
        %v550 = vmax.f32 %v548, %v536
        %v551 = vmax.f32 %v549, %v537
        %v552 = vmax.f32 %v550, %v538
        %v553 = vmax.f32 %v551, %v539
        %v554 = vmax.f32 %v552, %v540
        %v555 = vmax.f32 %v553, %v541
        %v556 = vmax.f32 %v554, %v542
        %v557 = vmax.f32 %v555, %v543
        // Predicated region
        $region37: #{tpu_custom_call.1} parent=31 // pred_check
          %p558 = pneg %p239
        $region38: #{tpu_custom_call.1} parent=31 // pred_check_branch
          %560 = sbr.rel (%p558) target = $region40
        $region39: #{tpu_custom_call.1} parent=31 // pred_region
          %561 = vst [vmem:[%s205] sm:$0xff] %v556
          %562 = vst [vmem:[%s205 + $0x8] sm:$0xff] %v557
        $region40: #{tpu_custom_call.1} parent=31 // pred_fallthru
          _
        // Predicated region
        $region41: #{tpu_custom_call.1} parent=31 // pred_check
          %p563 = pneg %p240
        $region42: #{tpu_custom_call.1} parent=31 // pred_check_branch
          %565 = sbr.rel (%p563) target = $region44
        $region43: #{tpu_custom_call.1} parent=31 // pred_region
          %v566 = vld [vmem:[%s205] sm:$0xff]
          %v567 = vld [vmem:[%s205 + $0x8] sm:$0xff]
          %v568 = vadd.f32 %v566, %v556
          %v569 = vadd.f32 %v567, %v557
          %570 = vst [vmem:[%s205] sm:$0xff] %v568
          %571 = vst [vmem:[%s205 + $0x8] sm:$0xff] %v569
        $region44: #{tpu_custom_call.1} parent=31 // pred_fallthru
          _
        %s572 = sand.u32 %s110, 1
        %s573 = scalar_lea.sflag [#allocation4], %s572
        %s574 = sand.u32 %s110, 1
        %s575 = smul.addr %s574, 16
        %s576 = scalar_lea.vmem [#allocation5], %s575
        // Predicated region
        $region45: #{tpu_custom_call.1} parent=31 // pred_check
          %p577 = pneg %p120
        $region46: #{tpu_custom_call.1} parent=31 // pred_check_branch
          %579 = sbr.rel (%p577) target = $region48
        $region47: #{tpu_custom_call.1} parent=31 // pred_region
          %581 = vsyncadd %s573, 0
          %s582 = smul.addr %s24, 8
          %s583 = scalar_lea.hbm %s3, %s582
          %s584 = sshll.u32 %s576, 4
          %s585 = int_to_ptr.vmem [resolvable:$true] %s584
          %s586 = sshll.u32 %s583, 4
          %s587 = int_to_ptr.hbm [resolvable:$true] %s586
          %592 = dma.vmem_to_hbm [thread:$0]  %s585, 256, %s587, %s573, 128, 256, 8
        $region48: #{tpu_custom_call.1} parent=31 // pred_fallthru
          _
      $region32: #{tpu_custom_call.1} parent=5 // pred_fallthru
        _
      %p593 = scmp.le.s32.totalorder 2, %s15
      // Predicated region
      $region49: #{tpu_custom_call.1} parent=5 // pred_check
        %p594 = pneg %p593
      $region50: #{tpu_custom_call.1} parent=5 // pred_check_branch
        %596 = sbr.rel (%p594) target = $region52
      $region51: #{tpu_custom_call.1} parent=5 // pred_region
        %s597 = ssub.s32 %s15, 2
        // Predicated region
        $region53: #{tpu_custom_call.1} parent=51 // pred_check
          %p598 = pneg %p126
        $region54: #{tpu_custom_call.1} parent=51 // pred_check_branch
          %600 = sbr.rel (%p598) target = $region56
        $region55: #{tpu_custom_call.1} parent=51 // pred_region
          %s601 = sand.u32 %s111, 1
          %s602 = scalar_lea.sflag [#allocation4], %s601
          %s603 = sand.u32 %s111, 1
          %s604 = smul.addr %s603, 16
          %s605 = scalar_lea.vmem [#allocation5], %s604
          %607 = dma.done %s602, 256
        $region56: #{tpu_custom_call.1} parent=51 // pred_fallthru
          _
      $region52: #{tpu_custom_call.1} parent=5 // pred_fallthru
        _
    $region6: #{tpu_custom_call.1} parent=1 // loop_footer
      %s19 = sadd.s32 1, %s15
    $region7: #{tpu_custom_call.1} parent=1 // loop_footer_branch
      %14 = sbr.rel target = $region3
    $region8: #{tpu_custom_call.1} parent=1 // loop_exit
      _
    %608 = vsyncpa [#allocation3], 1
    %s609 = scalar_lea.sflag [#allocation3], 1
    %610 = vsyncpa %s609, 1
    %611 = vsyncpa [#allocation4], 1
    %s612 = scalar_lea.sflag [#allocation4], 1
    %613 = vsyncpa %s612, 1

</llo_original>
